<compile_context>
chip_gen: v7x
topology: tpu7x:2x2x1
jax: 0.10.0
libtpu: 0.0.40
codegen_flags: <defaults>
</compile_context>

<pallas_src>
import jax
import jax.numpy as jnp
from jax import lax
from jax.experimental import pallas as pl
from jax.experimental.pallas import tpu as pltpu


def _make_attention_kernel(*, N, q_block, hb, dim_head, n_hg):
    gw = hb * dim_head  # lanes per head group

    def kernel(xkv_ref, wq_ref, wk_ref, wv_ref, wo_ref, b_ref, o_ref, cat_ref):
        g = pl.program_id(2)

        xkv = xkv_ref[0]                                          # (N, C) bf16
        if q_block == N:
            xq = xkv                                              # nq == 1: no extra slice
        else:
            q_start = pl.multiple_of(pl.program_id(1) * q_block, q_block)
            xq = xkv_ref[0, pl.ds(q_start, q_block), :]           # (TQ, C) bf16

        # Head-group projections (scale already folded into Wq). bf16 operands,
        # fp32 MXU accumulation, cast back to bf16 for the attention matmuls.
        q = jnp.dot(xq, wq_ref[g],
                    preferred_element_type=jnp.float32).astype(jnp.bfloat16)   # (TQ, gw)
        k = jnp.dot(xkv, wk_ref[g],
                    preferred_element_type=jnp.float32).astype(jnp.bfloat16)   # (N, gw)
        v = jnp.dot(xkv, wv_ref[g],
                    preferred_element_type=jnp.float32).astype(jnp.bfloat16)   # (N, gw)

        # Per-head attention inside the group (small unrolled loop).
        outs = []
        for j in range(hb):
            sl = slice(j * dim_head, (j + 1) * dim_head)
            # q_j @ k_j^T without materializing the transpose.
            dots = lax.dot_general(q[:, sl], k[:, sl],
                                   dimension_numbers=(((1,), (1,)), ((), ())),
                                   preferred_element_type=jnp.float32)         # (TQ, N)
            # Numerically stable softmax in fp32; divide goes to the EUP slot.
            m = jnp.max(dots, axis=-1, keepdims=True)
            e = jnp.exp(dots - m)
            l = jnp.sum(e, axis=-1, keepdims=True)
            attn = (e * pl.reciprocal(l, approx=True)).astype(jnp.bfloat16)    # (TQ, N)
            outs.append(jnp.dot(attn, v[:, sl],
                                preferred_element_type=jnp.float32)
                        .astype(jnp.bfloat16))                                 # (TQ, dh)
        group_out = outs[0] if hb == 1 else jnp.concatenate(outs, axis=-1)     # (TQ, gw)

        if n_hg == 1:
            merged = group_out                     # single group: skip the scratch round-trip
        else:
            # Static lane offsets (gated on the group id) -> plain masked stores,
            # no dynamic minor-dim indexing.
            for gg in range(n_hg):
                @pl.when(g == gg)
                def _store(gg=gg):
                    cat_ref[:, gg * gw:(gg + 1) * gw] = group_out
            merged = None

        @pl.when(g == n_hg - 1)
        def _finalize():
            src = merged if n_hg == 1 else cat_ref[...]            # (TQ, inner) bf16
            proj = jnp.dot(src, wo_ref[...],
                           preferred_element_type=jnp.float32)     # (TQ, C) fp32
            o_ref[0] = (proj + b_ref[...]).astype(o_ref.dtype)

    return kernel


def _pick_head_block(heads, dim_head, target_lanes=256):
    # 256 output lanes fills the v6e/v7x MXU; still 2x better than per-head on
    # v5e (128-wide MXU).  Clamp to a divisor of `heads`.
    hb = max(1, min(heads, max(1, target_lanes // max(dim_head, 1))))
    while heads % hb != 0:
        hb -= 1
    return hb


def _pick_q_block(B, N):
    # Prefer full-N Q blocks (nq = 1): K/V projected once per (batch, group).
    q_block = N
    # v7x shards the 'parallel' grid axes over 2 TensorCores: keep B*nq >= 2.
    if B == 1 and N % 16 == 0:
        q_block = N // 2
    # Bound the (TQ, N) fp32 softmax temporaries for long sequences.
    while q_block * N * 4 > 8 * 1024 * 1024 and q_block % 16 == 0:
        q_block //= 2
    return q_block


def attention(x, w_qkv, w_out, b_out, *, heads, dim_head,
              q_block=None, head_block=None):
    """x: (B, N, C) with C == heads * dim_head (the reference module's
    .view(b, n, h, c // h) implicitly requires this).  Weights are
    (in_features, out_features): y = x @ W (+ b)."""
    B, N, C = x.shape
    inner = heads * dim_head
    assert C == inner, "reference module implicitly requires dim == heads*dim_head"
    scale = dim_head ** -0.5

    hb = head_block or _pick_head_block(heads, dim_head)
    n_hg = heads // hb
    gw = hb * dim_head

    if q_block is None:
        q_block = _pick_q_block(B, N)
    if N % q_block != 0 or (q_block != N and q_block % 8 != 0):
        q_block = N
    nq = N // q_block

    # One-time wrapper-side layout + bf16 cast (halves weight/activation DMA).
    x_bf = x.astype(jnp.bfloat16)

    def per_group(w):  # (C, inner) -> (n_hg, C, gw), head-major column order preserved
        return w.reshape(C, n_hg, gw).transpose(1, 0, 2).astype(jnp.bfloat16)

    wq = per_group(w_qkv[:, :inner] * scale)        # scale folded into Q weights
    wk = per_group(w_qkv[:, inner:2 * inner])
    wv = per_group(w_qkv[:, 2 * inner:])
    wo = w_out.astype(jnp.bfloat16)                 # (inner, C), used whole at finalize
    bias = jnp.reshape(b_out, (1, C)).astype(jnp.float32)

    # Rough per-step working set -> scoped VMEM limit (re-derived, not a fixed 32 MiB).
    est = (2 * N * C * 2                                  # resident x block (bf16, 2 buffers)
           + 2 * (3 * C * inner + inner * C) * 2          # resident weights (bf16, 2 buffers)
           + q_block * inner * 2                          # concat scratch (bf16)
           + 2 * q_block * C * x.dtype.itemsize           # output double buffer
           + 4 * q_block * N * 4                          # softmax temporaries (fp32)
           + (q_block + 2 * N) * gw * 6)                  # q/k/v temporaries
    vmem_limit = int(min(96 * 1024 * 1024, max(32 * 1024 * 1024, est * 3 // 2)))

    kernel = _make_attention_kernel(N=N, q_block=q_block, hb=hb,
                                    dim_head=dim_head, n_hg=n_hg)

    return pl.pallas_call(
        kernel,
        out_shape=jax.ShapeDtypeStruct((B, N, C), x.dtype),
        grid=(B, nq, n_hg),
        in_specs=[
            pl.BlockSpec((1, N, C), lambda b, qi, g: (b, 0, 0)),        # x rows (K/V + Q slice)
            pl.BlockSpec((n_hg, C, gw), lambda b, qi, g: (0, 0, 0)),    # Wq (scaled), resident
            pl.BlockSpec((n_hg, C, gw), lambda b, qi, g: (0, 0, 0)),    # Wk, resident
            pl.BlockSpec((n_hg, C, gw), lambda b, qi, g: (0, 0, 0)),    # Wv, resident
            pl.BlockSpec((inner, C), lambda b, qi, g: (0, 0)),          # Wout, resident
            pl.BlockSpec((1, C), lambda b, qi, g: (0, 0)),              # bias
        ],
        out_specs=pl.BlockSpec((1, q_block, C), lambda b, qi, g: (b, qi, 0)),
        scratch_shapes=[pltpu.VMEM((q_block, inner), jnp.bfloat16)],    # concat of head outputs
        compiler_params=pltpu.CompilerParams(
            dimension_semantics=("parallel", "parallel", "arbitrary"),
            vmem_limit_bytes=vmem_limit),
    )(x_bf, wq, wk, wv, wo, bias)


def attention_reference(x, w_qkv, w_out, b_out, *, heads, dim_head):
    """Pure-JAX (fp32) reference mirroring the PyTorch forward (mask=None)."""
    B, N, C = x.shape
    inner = heads * dim_head
    scale = dim_head ** -0.5
    qkv = x @ w_qkv                                           # (B, N, 3*inner)
    q, k, v = jnp.split(qkv, 3, axis=-1)

    def to_heads(t):
        return jnp.transpose(t.reshape(B, N, heads, C // heads), (0, 2, 1, 3))

    q, k, v = map(to_heads, (q, k, v))                        # (B, h, N, dh)
    dots = jnp.einsum('bhid,bhjd->bhij', q, k) * scale
    attn = jax.nn.softmax(dots, axis=-1)
    out = jnp.einsum('bhij,bhjd->bhid', attn, v)              # (B, h, N, dh)
    out = jnp.transpose(out, (0, 2, 1, 3)).reshape(B, N, inner)
    return out @ w_out + jnp.reshape(b_out, (1, C))


# TODO(synk): the `mask is not None` branch of the reference forward relies on
# an un-imported `rearrange` and a non-in-place `masked_fill`, so it is broken
# / a no-op upstream; only the mask=None path is implemented here.  Dropout
# has p=0.0 (identity in eval mode).

if __name__ == "__main__":
    key = jax.random.PRNGKey(0)
    B, N = 2, 8
    heads, dim_head = 4, 8
    dim = heads * dim_head          # 32 (dim must equal heads*dim_head)
    inner = heads * dim_head

    k1, k2, k3, k4 = jax.random.split(key, 4)
    x = jax.random.normal(k1, (B, N, dim), dtype=jnp.float32)
    w_qkv = 0.1 * jax.random.normal(k2, (dim, 3 * inner), dtype=jnp.float32)
    w_out = 0.1 * jax.random.normal(k3, (inner, dim), dtype=jnp.float32)
    b_out = 0.1 * jax.random.normal(k4, (1, dim), dtype=jnp.float32)

    y = attention(x, w_qkv, w_out, b_out, heads=heads, dim_head=dim_head)
    jax.block_until_ready(y)

    y_ref = attention_reference(x, w_qkv, w_out, b_out, heads=heads, dim_head=dim_head)
    # bf16 MXU operands + approx reciprocal -> compare against fp32 ref loosely.
    assert jnp.allclose(y, y_ref, atol=5e-2, rtol=5e-2), "mismatch vs JAX reference"

    print("KERNEL_OK")
</pallas_src>

<mosaic_0001>
module attributes {stable_mosaic.version = 11 : i64} {
  func.func @kernel(%arg0: i32, %arg1: i32, %arg2: i32, %arg3: memref<1x8x32xbf16, #tpu.memory_space<vmem>>, %arg4: memref<1x32x32xbf16, #tpu.memory_space<vmem>>, %arg5: memref<1x32x32xbf16, #tpu.memory_space<vmem>>, %arg6: memref<1x32x32xbf16, #tpu.memory_space<vmem>>, %arg7: memref<32x32xbf16, #tpu.memory_space<vmem>>, %arg8: memref<1x32xf32, #tpu.memory_space<vmem>>, %arg9: memref<1x8x32xf32, #tpu.memory_space<vmem>>, %arg10: memref<8x32xbf16, #tpu.memory_space<vmem>>) attributes {dimension_semantics = [#tpu.dimension_semantics<parallel>, #tpu.dimension_semantics<parallel>, #tpu.dimension_semantics<arbitrary>], iteration_bounds = array<i64: 2, 1, 1>, scalar_prefetch = 0 : i64, scratch_operands = 1 : i64, tpu.core_type = #tpu.core_type<tc>, window_params = [{transform_indices = @transform_0, window_bounds = array<i64: 1, 8, 32>}, {pipeline_mode = #tpu.pipeline_mode<synchronous>, transform_indices = @transform_1, window_bounds = array<i64: 1, 32, 32>}, {pipeline_mode = #tpu.pipeline_mode<synchronous>, transform_indices = @transform_2, window_bounds = array<i64: 1, 32, 32>}, {pipeline_mode = #tpu.pipeline_mode<synchronous>, transform_indices = @transform_3, window_bounds = array<i64: 1, 32, 32>}, {pipeline_mode = #tpu.pipeline_mode<synchronous>, transform_indices = @transform_4, window_bounds = array<i64: 32, 32>}, {pipeline_mode = #tpu.pipeline_mode<synchronous>, transform_indices = @transform_5, window_bounds = array<i64: 1, 32>}, {transform_indices = @transform_6, window_bounds = array<i64: 1, 8, 32>}]} {
    %c0 = arith.constant 0 : index
    %c0_0 = arith.constant 0 : index
    %c0_1 = arith.constant 0 : index
    %0 = vector.load %arg3[%c0, %c0_0, %c0_1] : memref<1x8x32xbf16, #tpu.memory_space<vmem>>, vector<1x8x32xbf16>
    %1 = vector.shape_cast %0 : vector<1x8x32xbf16> to vector<8x32xbf16>
    %2 = arith.index_cast %arg2 : i32 to index
    %c0_2 = arith.constant 0 : index
    %c0_3 = arith.constant 0 : index
    %3 = vector.load %arg4[%2, %c0_2, %c0_3] : memref<1x32x32xbf16, #tpu.memory_space<vmem>>, vector<1x32x32xbf16>
    %4 = vector.shape_cast %3 : vector<1x32x32xbf16> to vector<32x32xbf16>
    %cst = arith.constant dense<0.000000e+00> : vector<8x32xf32>
    %5 = tpu.matmul %1, %4, %cst {dimension_numbers = #tpu.dot_dimension_numbers<[1], [0], [0], [1], [0, 0, 1, 1], [], []>} : vector<8x32xbf16>, vector<32x32xbf16>, vector<8x32xf32> -> vector<8x32xf32>
    %6 = arith.truncf %5 : vector<8x32xf32> to vector<8x32xbf16>
    %7 = arith.index_cast %arg2 : i32 to index
    %c0_4 = arith.constant 0 : index
    %c0_5 = arith.constant 0 : index
    %8 = vector.load %arg5[%7, %c0_4, %c0_5] : memref<1x32x32xbf16, #tpu.memory_space<vmem>>, vector<1x32x32xbf16>
    %9 = vector.shape_cast %8 : vector<1x32x32xbf16> to vector<32x32xbf16>
    %cst_6 = arith.constant dense<0.000000e+00> : vector<8x32xf32>
    %10 = tpu.matmul %1, %9, %cst_6 {dimension_numbers = #tpu.dot_dimension_numbers<[1], [0], [0], [1], [0, 0, 1, 1], [], []>} : vector<8x32xbf16>, vector<32x32xbf16>, vector<8x32xf32> -> vector<8x32xf32>
    %11 = arith.truncf %10 : vector<8x32xf32> to vector<8x32xbf16>
    %12 = arith.index_cast %arg2 : i32 to index
    %c0_7 = arith.constant 0 : index
    %c0_8 = arith.constant 0 : index
    %13 = vector.load %arg6[%12, %c0_7, %c0_8] : memref<1x32x32xbf16, #tpu.memory_space<vmem>>, vector<1x32x32xbf16>
    %14 = vector.shape_cast %13 : vector<1x32x32xbf16> to vector<32x32xbf16>
    %cst_9 = arith.constant dense<0.000000e+00> : vector<8x32xf32>
    %15 = tpu.matmul %1, %14, %cst_9 {dimension_numbers = #tpu.dot_dimension_numbers<[1], [0], [0], [1], [0, 0, 1, 1], [], []>} : vector<8x32xbf16>, vector<32x32xbf16>, vector<8x32xf32> -> vector<8x32xf32>
    %16 = arith.truncf %15 : vector<8x32xf32> to vector<8x32xbf16>
    %17 = vector.extract_strided_slice %6 {offsets = [0, 0], sizes = [8, 8], strides = [1, 1]} : vector<8x32xbf16> to vector<8x8xbf16>
    %18 = vector.extract_strided_slice %11 {offsets = [0, 0], sizes = [8, 8], strides = [1, 1]} : vector<8x32xbf16> to vector<8x8xbf16>
    %cst_10 = arith.constant dense<0.000000e+00> : vector<8x8xf32>
    %19 = tpu.matmul %17, %18, %cst_10 {dimension_numbers = #tpu.dot_dimension_numbers<[1], [1], [0], [0], [0, 0, 1, 0], [], []>} : vector<8x8xbf16>, vector<8x8xbf16>, vector<8x8xf32> -> vector<8x8xf32>
    %cst_11 = arith.constant dense<0xFF800000> : vector<8xf32>
    %20 = vector.multi_reduction <maximumf>, %19, %cst_11 [1] : vector<8x8xf32> to vector<8xf32>
    %21 = vector.shape_cast %20 : vector<8xf32> to vector<8x1xf32>
    %22 = vector.broadcast %21 : vector<8x1xf32> to vector<8x8xf32>
    %23 = arith.subf %19, %22 : vector<8x8xf32>
    %24 = math.exp %23 : vector<8x8xf32>
    %cst_12 = arith.constant dense<0.000000e+00> : vector<8xf32>
    %25 = vector.multi_reduction <add>, %24, %cst_12 [1] : vector<8x8xf32> to vector<8xf32>
    %26 = vector.shape_cast %25 : vector<8xf32> to vector<8x1xf32>
    %27 = tpu.reciprocal %26 {approx = true} : vector<8x1xf32> -> vector<8x1xf32>
    %28 = vector.broadcast %27 : vector<8x1xf32> to vector<8x8xf32>
    %29 = arith.mulf %24, %28 : vector<8x8xf32>
    %30 = arith.truncf %29 : vector<8x8xf32> to vector<8x8xbf16>
    %31 = vector.extract_strided_slice %16 {offsets = [0, 0], sizes = [8, 8], strides = [1, 1]} : vector<8x32xbf16> to vector<8x8xbf16>
    %cst_13 = arith.constant dense<0.000000e+00> : vector<8x8xf32>
    %32 = tpu.matmul %30, %31, %cst_13 {dimension_numbers = #tpu.dot_dimension_numbers<[1], [0], [0], [1], [0, 0, 1, 1], [], []>} : vector<8x8xbf16>, vector<8x8xbf16>, vector<8x8xf32> -> vector<8x8xf32>
    %33 = arith.truncf %32 : vector<8x8xf32> to vector<8x8xbf16>
    %34 = vector.extract_strided_slice %6 {offsets = [0, 8], sizes = [8, 8], strides = [1, 1]} : vector<8x32xbf16> to vector<8x8xbf16>
    %35 = vector.extract_strided_slice %11 {offsets = [0, 8], sizes = [8, 8], strides = [1, 1]} : vector<8x32xbf16> to vector<8x8xbf16>
    %cst_14 = arith.constant dense<0.000000e+00> : vector<8x8xf32>
    %36 = tpu.matmul %34, %35, %cst_14 {dimension_numbers = #tpu.dot_dimension_numbers<[1], [1], [0], [0], [0, 0, 1, 0], [], []>} : vector<8x8xbf16>, vector<8x8xbf16>, vector<8x8xf32> -> vector<8x8xf32>
    %cst_15 = arith.constant dense<0xFF800000> : vector<8xf32>
    %37 = vector.multi_reduction <maximumf>, %36, %cst_15 [1] : vector<8x8xf32> to vector<8xf32>
    %38 = vector.shape_cast %37 : vector<8xf32> to vector<8x1xf32>
    %39 = vector.broadcast %38 : vector<8x1xf32> to vector<8x8xf32>
    %40 = arith.subf %36, %39 : vector<8x8xf32>
    %41 = math.exp %40 : vector<8x8xf32>
    %cst_16 = arith.constant dense<0.000000e+00> : vector<8xf32>
    %42 = vector.multi_reduction <add>, %41, %cst_16 [1] : vector<8x8xf32> to vector<8xf32>
    %43 = vector.shape_cast %42 : vector<8xf32> to vector<8x1xf32>
    %44 = tpu.reciprocal %43 {approx = true} : vector<8x1xf32> -> vector<8x1xf32>
    %45 = vector.broadcast %44 : vector<8x1xf32> to vector<8x8xf32>
    %46 = arith.mulf %41, %45 : vector<8x8xf32>
    %47 = arith.truncf %46 : vector<8x8xf32> to vector<8x8xbf16>
    %48 = vector.extract_strided_slice %16 {offsets = [0, 8], sizes = [8, 8], strides = [1, 1]} : vector<8x32xbf16> to vector<8x8xbf16>
    %cst_17 = arith.constant dense<0.000000e+00> : vector<8x8xf32>
    %49 = tpu.matmul %47, %48, %cst_17 {dimension_numbers = #tpu.dot_dimension_numbers<[1], [0], [0], [1], [0, 0, 1, 1], [], []>} : vector<8x8xbf16>, vector<8x8xbf16>, vector<8x8xf32> -> vector<8x8xf32>
    %50 = arith.truncf %49 : vector<8x8xf32> to vector<8x8xbf16>
    %51 = vector.extract_strided_slice %6 {offsets = [0, 16], sizes = [8, 8], strides = [1, 1]} : vector<8x32xbf16> to vector<8x8xbf16>
    %52 = vector.extract_strided_slice %11 {offsets = [0, 16], sizes = [8, 8], strides = [1, 1]} : vector<8x32xbf16> to vector<8x8xbf16>
    %cst_18 = arith.constant dense<0.000000e+00> : vector<8x8xf32>
    %53 = tpu.matmul %51, %52, %cst_18 {dimension_numbers = #tpu.dot_dimension_numbers<[1], [1], [0], [0], [0, 0, 1, 0], [], []>} : vector<8x8xbf16>, vector<8x8xbf16>, vector<8x8xf32> -> vector<8x8xf32>
    %cst_19 = arith.constant dense<0xFF800000> : vector<8xf32>
    %54 = vector.multi_reduction <maximumf>, %53, %cst_19 [1] : vector<8x8xf32> to vector<8xf32>
    %55 = vector.shape_cast %54 : vector<8xf32> to vector<8x1xf32>
    %56 = vector.broadcast %55 : vector<8x1xf32> to vector<8x8xf32>
    %57 = arith.subf %53, %56 : vector<8x8xf32>
    %58 = math.exp %57 : vector<8x8xf32>
    %cst_20 = arith.constant dense<0.000000e+00> : vector<8xf32>
    %59 = vector.multi_reduction <add>, %58, %cst_20 [1] : vector<8x8xf32> to vector<8xf32>
    %60 = vector.shape_cast %59 : vector<8xf32> to vector<8x1xf32>
    %61 = tpu.reciprocal %60 {approx = true} : vector<8x1xf32> -> vector<8x1xf32>
    %62 = vector.broadcast %61 : vector<8x1xf32> to vector<8x8xf32>
    %63 = arith.mulf %58, %62 : vector<8x8xf32>
    %64 = arith.truncf %63 : vector<8x8xf32> to vector<8x8xbf16>
    %65 = vector.extract_strided_slice %16 {offsets = [0, 16], sizes = [8, 8], strides = [1, 1]} : vector<8x32xbf16> to vector<8x8xbf16>
    %cst_21 = arith.constant dense<0.000000e+00> : vector<8x8xf32>
    %66 = tpu.matmul %64, %65, %cst_21 {dimension_numbers = #tpu.dot_dimension_numbers<[1], [0], [0], [1], [0, 0, 1, 1], [], []>} : vector<8x8xbf16>, vector<8x8xbf16>, vector<8x8xf32> -> vector<8x8xf32>
    %67 = arith.truncf %66 : vector<8x8xf32> to vector<8x8xbf16>
    %68 = vector.extract_strided_slice %6 {offsets = [0, 24], sizes = [8, 8], strides = [1, 1]} : vector<8x32xbf16> to vector<8x8xbf16>
    %69 = vector.extract_strided_slice %11 {offsets = [0, 24], sizes = [8, 8], strides = [1, 1]} : vector<8x32xbf16> to vector<8x8xbf16>
    %cst_22 = arith.constant dense<0.000000e+00> : vector<8x8xf32>
    %70 = tpu.matmul %68, %69, %cst_22 {dimension_numbers = #tpu.dot_dimension_numbers<[1], [1], [0], [0], [0, 0, 1, 0], [], []>} : vector<8x8xbf16>, vector<8x8xbf16>, vector<8x8xf32> -> vector<8x8xf32>
    %cst_23 = arith.constant dense<0xFF800000> : vector<8xf32>
    %71 = vector.multi_reduction <maximumf>, %70, %cst_23 [1] : vector<8x8xf32> to vector<8xf32>
    %72 = vector.shape_cast %71 : vector<8xf32> to vector<8x1xf32>
    %73 = vector.broadcast %72 : vector<8x1xf32> to vector<8x8xf32>
    %74 = arith.subf %70, %73 : vector<8x8xf32>
    %75 = math.exp %74 : vector<8x8xf32>
    %cst_24 = arith.constant dense<0.000000e+00> : vector<8xf32>
    %76 = vector.multi_reduction <add>, %75, %cst_24 [1] : vector<8x8xf32> to vector<8xf32>
    %77 = vector.shape_cast %76 : vector<8xf32> to vector<8x1xf32>
    %78 = tpu.reciprocal %77 {approx = true} : vector<8x1xf32> -> vector<8x1xf32>
    %79 = vector.broadcast %78 : vector<8x1xf32> to vector<8x8xf32>
    %80 = arith.mulf %75, %79 : vector<8x8xf32>
    %81 = arith.truncf %80 : vector<8x8xf32> to vector<8x8xbf16>
    %82 = vector.extract_strided_slice %16 {offsets = [0, 24], sizes = [8, 8], strides = [1, 1]} : vector<8x32xbf16> to vector<8x8xbf16>
    %cst_25 = arith.constant dense<0.000000e+00> : vector<8x8xf32>
    %83 = tpu.matmul %81, %82, %cst_25 {dimension_numbers = #tpu.dot_dimension_numbers<[1], [0], [0], [1], [0, 0, 1, 1], [], []>} : vector<8x8xbf16>, vector<8x8xbf16>, vector<8x8xf32> -> vector<8x8xf32>
    %84 = arith.truncf %83 : vector<8x8xf32> to vector<8x8xbf16>
    %85 = tpu.concatenate %33, %50, %67, %84 in 1 : vector<8x8xbf16>, vector<8x8xbf16>, vector<8x8xbf16>, vector<8x8xbf16> -> vector<8x32xbf16>
    %c0_i32 = arith.constant 0 : i32
    %86 = arith.cmpi eq, %arg2, %c0_i32 : i32
    %87 = arith.extui %86 : i1 to i32
    %c0_i32_26 = arith.constant 0 : i32
    %88 = arith.cmpi ne, %87, %c0_i32_26 : i32
    scf.if %88 {
      %c0_27 = arith.constant 0 : index
      %c0_28 = arith.constant 0 : index
      %89 = vector.load %arg7[%c0_27, %c0_28] : memref<32x32xbf16, #tpu.memory_space<vmem>>, vector<32x32xbf16>
      %cst_29 = arith.constant dense<0.000000e+00> : vector<8x32xf32>
      %90 = tpu.matmul %85, %89, %cst_29 {dimension_numbers = #tpu.dot_dimension_numbers<[1], [0], [0], [1], [0, 0, 1, 1], [], []>} : vector<8x32xbf16>, vector<32x32xbf16>, vector<8x32xf32> -> vector<8x32xf32>
      %c0_30 = arith.constant 0 : index
      %c0_31 = arith.constant 0 : index
      %91 = vector.load %arg8[%c0_30, %c0_31] : memref<1x32xf32, #tpu.memory_space<vmem>>, vector<1x32xf32>
      %92 = vector.broadcast %91 : vector<1x32xf32> to vector<8x32xf32>
      %93 = arith.addf %90, %92 : vector<8x32xf32>
      %c0_32 = arith.constant 0 : index
      %c0_33 = arith.constant 0 : index
      %c0_34 = arith.constant 0 : index
      %94 = vector.load %arg9[%c0_32, %c0_33, %c0_34] : memref<1x8x32xf32, #tpu.memory_space<vmem>>, vector<1x8x32xf32>
      %95 = vector.shape_cast %94 : vector<1x8x32xf32> to vector<8x32xf32>
      %96 = vector.shape_cast %93 : vector<8x32xf32> to vector<1x8x32xf32>
      tpu.vector_store %arg9[%c0_32, %c0_33, %c0_34], %96 {strides = array<i32>} : memref<1x8x32xf32, #tpu.memory_space<vmem>>, vector<1x8x32xf32>,
    } else {
    }
    return
  }
  func.func @transform_0(%arg0: i32, %arg1: i32, %arg2: i32) -> (i32, i32, i32) {
    %c0_i32 = arith.constant 0 : i32
    %c0_i32_0 = arith.constant 0 : i32
    %c0_i32_1 = arith.constant 0 : i32
    return %arg0, %c0_i32, %c0_i32_0 : i32, i32, i32
  }
  func.func @transform_1(%arg0: i32, %arg1: i32, %arg2: i32) -> (i32, i32, i32) {
    %c0_i32 = arith.constant 0 : i32
    %c0_i32_0 = arith.constant 0 : i32
    %c0_i32_1 = arith.constant 0 : i32
    %c0_i32_2 = arith.constant 0 : i32
    return %c0_i32, %c0_i32_0, %c0_i32_1 : i32, i32, i32
  }
  func.func @transform_2(%arg0: i32, %arg1: i32, %arg2: i32) -> (i32, i32, i32) {
    %c0_i32 = arith.constant 0 : i32
    %c0_i32_0 = arith.constant 0 : i32
    %c0_i32_1 = arith.constant 0 : i32
    %c0_i32_2 = arith.constant 0 : i32
    return %c0_i32, %c0_i32_0, %c0_i32_1 : i32, i32, i32
  }
  func.func @transform_3(%arg0: i32, %arg1: i32, %arg2: i32) -> (i32, i32, i32) {
    %c0_i32 = arith.constant 0 : i32
    %c0_i32_0 = arith.constant 0 : i32
    %c0_i32_1 = arith.constant 0 : i32
    %c0_i32_2 = arith.constant 0 : i32
    return %c0_i32, %c0_i32_0, %c0_i32_1 : i32, i32, i32
  }
  func.func @transform_4(%arg0: i32, %arg1: i32, %arg2: i32) -> (i32, i32) {
    %c0_i32 = arith.constant 0 : i32
    %c0_i32_0 = arith.constant 0 : i32
    %c0_i32_1 = arith.constant 0 : i32
    return %c0_i32, %c0_i32_0 : i32, i32
  }
  func.func @transform_5(%arg0: i32, %arg1: i32, %arg2: i32) -> (i32, i32) {
    %c0_i32 = arith.constant 0 : i32
    %c0_i32_0 = arith.constant 0 : i32
    %c0_i32_1 = arith.constant 0 : i32
    return %c0_i32, %c0_i32_0 : i32, i32
  }
  func.func @transform_6(%arg0: i32, %arg1: i32, %arg2: i32) -> (i32, i32, i32) {
    %c0_i32 = arith.constant 0 : i32
    %c0_i32_0 = arith.constant 0 : i32
    return %arg0, %arg1, %c0_i32 : i32, i32, i32
  }
}

</mosaic_0001>

<llo_original>
// kernel: tpu_custom_call.1
$region0: #{tpu_custom_call.1}
  #allocation0 [shape = 'u32[]', space=smem, size = 0x4, offset = 0x4, fixed_abs, tag = 'smem constant byte address 0x4 - core index']
  #allocation1 [shape = 'u32[144,128]{1,0:T(1,128)}', space=vmem, size = 0x12000, scoped, tag = 'internal scratch']
  #allocation2 [shape = 'bf16[8,32]{1,0:T(8,128)(2,1)}', space=vmem, size = 0x800, scoped, tag = 'scratch operand']
  %s0 = inlined_call_operand.hbm [shape: bf16[2,8,32], index: 0, kind: input, shape index: {}]
  %s1 = inlined_call_operand.hbm [shape: bf16[1,32,32], index: 1, kind: input, shape index: {}]
  %s2 = inlined_call_operand.hbm [shape: bf16[1,32,32], index: 2, kind: input, shape index: {}]
  %s3 = inlined_call_operand.hbm [shape: bf16[1,32,32], index: 3, kind: input, shape index: {}]
  %s4 = inlined_call_operand.hbm [shape: bf16[32,32], index: 4, kind: input, shape index: {}]
  %s5 = inlined_call_operand.vmem [shape: f32[1,32], index: 5, kind: input, shape index: {}]
  %s6 = inlined_call_operand.hbm [shape: f32[2,8,32], index: 6, kind: output, shape index: {}]
  %s7 = sld [smem:[#allocation0]]
  $region81: #{tpu_custom_call.1} parent=0
    _
  %s9 = ssub.s32 1, %s7
  %s10 = scalar_select 0, %s9, %s7
  $region1: #{tpu_custom_call.1} parent=0
    #allocation3 [shape = 'u8[4096]{0}', space=vmem, size = 0x1000, scoped, tag = 'input window, operand 0']
    #allocation4 [shape = 's32[2]{0}', space=sflag, size = 0x8, scoped, tag = 'scoped memory for tpu_custom_call.1']
    #allocation5 [shape = 's32[2]{0}', space=sflag, size = 0x8, scoped, tag = 'scoped memory for tpu_custom_call.1']
    #allocation6 [shape = 'u8[8192]{0}', space=vmem, size = 0x2000, scoped, tag = 'input window, operand 1, single buffered']
    #allocation7 [shape = 's32[1]{0}', space=sflag, size = 0x4, scoped, tag = 'scoped memory for tpu_custom_call.1']
    #allocation8 [shape = 'u8[8192]{0}', space=vmem, size = 0x2000, scoped, tag = 'input window, operand 2, single buffered']
    #allocation9 [shape = 'u8[8192]{0}', space=vmem, size = 0x2000, scoped, tag = 'input window, operand 3, single buffered']
    #allocation10 [shape = 's32[1]{0}', space=sflag, size = 0x4, scoped, tag = 'scoped memory for tpu_custom_call.1']
    #allocation11 [shape = 'u8[8192]{0}', space=vmem, size = 0x2000, scoped, tag = 'input window, operand 4, single buffered']
    #allocation12 [shape = 'u8[8192]{0}', space=vmem, size = 0x2000, scoped, tag = 'output window, operand 0']
    %11 = vsyncpa [#allocation4], 0
    %s12 = scalar_lea.sflag [#allocation4], 1
    %13 = vsyncpa %s12, 0
    %14 = vsyncpa [#allocation7], 0
    %15 = vsyncpa [#allocation10], 0
    %16 = vsyncpa [#allocation5], 0
    %s17 = scalar_lea.sflag [#allocation5], 1
    %18 = vsyncpa %s17, 0
    loop: start=0, step=1, limit=4
    $region2: #{tpu_custom_call.1} parent=1 // loop_pre_header
      _
    $region3: #{tpu_custom_call.1} parent=1 // loop_header
      %s20 = sphi 0, %s24
      %p21 = scmp.ge.s32.totalorder %s20, 4
      %s27 = sphi 0, %s46
      %s28 = sphi 0, %s42
      %s29 = sphi 0, %s38
      %s30 = sphi 0, %s27
      %s31 = sphi 0, %s28
      %s32 = sphi 0, %s29
      %s33 = sphi 0, %s30
      %s34 = sphi 0, %s31
      %s35 = sphi 0, %s32
      %s49 = sphi 0, %s51
      %s52 = sphi 0, %s49
      %s53 = sphi 0, %s52
      %s69 = sphi 0, %s53
      %s73 = sphi 0, %s73
      %s75 = sphi 0, %s73
      %s76 = sphi 0, %s75
      %s90 = sphi 0, %s76
      %s94 = sphi 0, %s94
      %s96 = sphi 0, %s94
      %s97 = sphi 0, %s96
      %s111 = sphi 0, %s97
      %s115 = sphi 0, %s115
      %s117 = sphi 0, %s115
      %s118 = sphi 0, %s117
      %s132 = sphi 0, %s118
      %s136 = sphi 0, %s136
      %s138 = sphi 0, %s136
      %s139 = sphi 0, %s138
      %s153 = sphi 0, %s139
      %s157 = sphi 0, %s157
      %s159 = sphi 0, %s157
      %s160 = sphi 0, %s159
      %s174 = sphi 0, %s160
      %s182 = sphi 0, %s184
      %s185 = sphi 0, %s182
      %s186 = sphi 0, %s185
      %s202 = sphi 0, %s186
    $region4: #{tpu_custom_call.1} parent=1 // loop_header_branch
      %23 = sbr.rel (%p21) target = $region8
    $region5: #{tpu_custom_call.1} parent=1 // loop_body
      %s25 = ssub.s32 %s20, 1
      %s26 = ssub.s32 %s20, 2
      %s36 = sadd.s32 1, %s29
      %p37 = scmp.ge.s32.totalorder %s36, 1
      %s38 = scalar_select %p37, 0, %s36
      %s39 = sadd.s32 1, %s28
      %s40 = scalar_select %p37, %s39, %s28
      %p41 = scmp.ge.s32.totalorder %s40, 1
      %s42 = scalar_select %p41, 0, %s40
      %s43 = sadd.s32 1, %s27
      %s44 = scalar_select %p41, %s43, %s27
      %p45 = scmp.ge.s32.totalorder %s44, 2
      %s46 = scalar_select %p45, 0, %s44
      %s47 = ssub.s32 %s27, %s46
      %p48 = scmp.eq.s32.totalorder %s47, 0
      %s50 = sadd.s32 %s49, 1
      %s51 = scalar_select %p48, %s49, %s50
      %p54 = pneg %p48
      %p55 = scmp.eq.s32.totalorder %s20, 1
      %p56 = por %p54, %p55
      %p57 = scmp.ne.s32.totalorder %s49, %s52
      %p58 = scmp.eq.s32.totalorder %s20, 0
      %p59 = por %p57, %p58
      %p60 = scmp.ne.s32.totalorder %s49, %s52
      %p61 = scmp.eq.s32.totalorder %s25, 1
      %p62 = por %p60, %p61
      %p63 = scmp.ne.s32.totalorder %s52, %s53
      %p64 = scmp.eq.s32.totalorder %s25, 0
      %p65 = por %p63, %p64
      %p66 = scmp.ne.s32.totalorder %s52, %s53
      %p67 = scmp.eq.s32.totalorder %s26, 1
      %p68 = por %p66, %p67
      %p70 = scmp.ne.s32.totalorder %s53, %s69
      %p71 = scmp.eq.s32.totalorder %s26, 0
      %p72 = por %p70, %p71
      %s74 = sadd.s32 %s73, 1
      %p77 = scmp.eq.s32.totalorder %s20, 1
      %p78 = scmp.ne.s32.totalorder %s73, %s75
      %p79 = scmp.eq.s32.totalorder %s20, 0
      %p80 = por %p78, %p79
      %p81 = scmp.ne.s32.totalorder %s73, %s75
      %p82 = scmp.eq.s32.totalorder %s25, 1
      %p83 = por %p81, %p82
      %p84 = scmp.ne.s32.totalorder %s75, %s76
      %p85 = scmp.eq.s32.totalorder %s25, 0
      %p86 = por %p84, %p85
      %p87 = scmp.ne.s32.totalorder %s75, %s76
      %p88 = scmp.eq.s32.totalorder %s26, 1
      %p89 = por %p87, %p88
      %p91 = scmp.ne.s32.totalorder %s76, %s90
      %p92 = scmp.eq.s32.totalorder %s26, 0
      %p93 = por %p91, %p92
      %s95 = sadd.s32 %s94, 1
      %p98 = scmp.eq.s32.totalorder %s20, 1
      %p99 = scmp.ne.s32.totalorder %s94, %s96
      %p100 = scmp.eq.s32.totalorder %s20, 0
      %p101 = por %p99, %p100
      %p102 = scmp.ne.s32.totalorder %s94, %s96
      %p103 = scmp.eq.s32.totalorder %s25, 1
      %p104 = por %p102, %p103
      %p105 = scmp.ne.s32.totalorder %s96, %s97
      %p106 = scmp.eq.s32.totalorder %s25, 0
      %p107 = por %p105, %p106
      %p108 = scmp.ne.s32.totalorder %s96, %s97
      %p109 = scmp.eq.s32.totalorder %s26, 1
      %p110 = por %p108, %p109
      %p112 = scmp.ne.s32.totalorder %s97, %s111
      %p113 = scmp.eq.s32.totalorder %s26, 0
      %p114 = por %p112, %p113
      %s116 = sadd.s32 %s115, 1
      %p119 = scmp.eq.s32.totalorder %s20, 1
      %p120 = scmp.ne.s32.totalorder %s115, %s117
      %p121 = scmp.eq.s32.totalorder %s20, 0
      %p122 = por %p120, %p121
      %p123 = scmp.ne.s32.totalorder %s115, %s117
      %p124 = scmp.eq.s32.totalorder %s25, 1
      %p125 = por %p123, %p124
      %p126 = scmp.ne.s32.totalorder %s117, %s118
      %p127 = scmp.eq.s32.totalorder %s25, 0
      %p128 = por %p126, %p127
      %p129 = scmp.ne.s32.totalorder %s117, %s118
      %p130 = scmp.eq.s32.totalorder %s26, 1
      %p131 = por %p129, %p130
      %p133 = scmp.ne.s32.totalorder %s118, %s132
      %p134 = scmp.eq.s32.totalorder %s26, 0
      %p135 = por %p133, %p134
      %s137 = sadd.s32 %s136, 1
      %p140 = scmp.eq.s32.totalorder %s20, 1
      %p141 = scmp.ne.s32.totalorder %s136, %s138
      %p142 = scmp.eq.s32.totalorder %s20, 0
      %p143 = por %p141, %p142
      %p144 = scmp.ne.s32.totalorder %s136, %s138
      %p145 = scmp.eq.s32.totalorder %s25, 1
      %p146 = por %p144, %p145
      %p147 = scmp.ne.s32.totalorder %s138, %s139
      %p148 = scmp.eq.s32.totalorder %s25, 0
      %p149 = por %p147, %p148
      %p150 = scmp.ne.s32.totalorder %s138, %s139
      %p151 = scmp.eq.s32.totalorder %s26, 1
      %p152 = por %p150, %p151
      %p154 = scmp.ne.s32.totalorder %s139, %s153
      %p155 = scmp.eq.s32.totalorder %s26, 0
      %p156 = por %p154, %p155
      %s158 = sadd.s32 %s157, 1
      %p161 = scmp.eq.s32.totalorder %s20, 1
      %p162 = scmp.ne.s32.totalorder %s157, %s159
      %p163 = scmp.eq.s32.totalorder %s20, 0
      %p164 = por %p162, %p163
      %p165 = scmp.ne.s32.totalorder %s157, %s159
      %p166 = scmp.eq.s32.totalorder %s25, 1
      %p167 = por %p165, %p166
      %p168 = scmp.ne.s32.totalorder %s159, %s160
      %p169 = scmp.eq.s32.totalorder %s25, 0
      %p170 = por %p168, %p169
      %p171 = scmp.ne.s32.totalorder %s159, %s160
      %p172 = scmp.eq.s32.totalorder %s26, 1
      %p173 = por %p171, %p172
      %p175 = scmp.ne.s32.totalorder %s160, %s174
      %p176 = scmp.eq.s32.totalorder %s26, 0
      %p177 = por %p175, %p176
      %s178 = ssub.s32 %s27, %s46
      %s179 = ssub.s32 %s28, %s42
      %s180 = sor.u32 %s178, %s179
      %p181 = scmp.eq.s32.totalorder %s180, 0
      %s183 = sadd.s32 %s182, 1
      %s184 = scalar_select %p181, %s182, %s183
      %p187 = pneg %p181
      %p188 = scmp.eq.s32.totalorder %s20, 1
      %p189 = por %p187, %p188
      %p190 = scmp.ne.s32.totalorder %s182, %s185
      %p191 = scmp.eq.s32.totalorder %s20, 0
      %p192 = por %p190, %p191
      %p193 = scmp.ne.s32.totalorder %s182, %s185
      %p194 = scmp.eq.s32.totalorder %s25, 1
      %p195 = por %p193, %p194
      %p196 = scmp.ne.s32.totalorder %s185, %s186
      %p197 = scmp.eq.s32.totalorder %s25, 0
      %p198 = por %p196, %p197
      %p199 = scmp.ne.s32.totalorder %s185, %s186
      %p200 = scmp.eq.s32.totalorder %s26, 1
      %p201 = por %p199, %p200
      %p203 = scmp.ne.s32.totalorder %s186, %s202
      %p204 = scmp.eq.s32.totalorder %s26, 0
      %p205 = por %p203, %p204
      %p206 = scmp.le.s32.totalorder 1, %s20
      %p207 = scmp.lt.s32.totalorder %s20, 3
      %p208 = pnand %p206, %p207
      %p209 = pneg %p208
      // Predicated region
      $region9: #{tpu_custom_call.1} parent=5 // pred_check
        _
      $region10: #{tpu_custom_call.1} parent=5 // pred_check_branch
        %211 = sbr.rel (%p208) target = $region12
      $region11: #{tpu_custom_call.1} parent=5 // pred_region
        %s212 = ssub.s32 %s20, 1
        // Predicated region
        $region13: #{tpu_custom_call.1} parent=11 // pred_check
          %p213 = pneg %p86
        $region14: #{tpu_custom_call.1} parent=11 // pred_check_branch
          %215 = sbr.rel (%p213) target = $region16
        $region15: #{tpu_custom_call.1} parent=11 // pred_region
          %s217 = ssub.s32 256, 256
          %218 = vsyncadd [#allocation7], %s217
          %s219 = sshll.u32 [#allocation6], 4
          %s220 = int_to_ptr.vmem [resolvable:$true] %s219
          %225 = dma.hbm_to_vmem [thread:$0]  %s1, 256, %s220, [#allocation7], 64, 64, 4
        $region16: #{tpu_custom_call.1} parent=11 // pred_fallthru
          _
        // Predicated region
        $region17: #{tpu_custom_call.1} parent=11 // pred_check
          %p226 = pneg %p107
        $region18: #{tpu_custom_call.1} parent=11 // pred_check_branch
          %228 = sbr.rel (%p226) target = $region20
        $region19: #{tpu_custom_call.1} parent=11 // pred_region
          %s230 = ssub.s32 256, 256
          %231 = vsyncadd [#allocation7], %s230
          %s232 = sshll.u32 [#allocation8], 4
          %s233 = int_to_ptr.vmem [resolvable:$true] %s232
          %238 = dma.hbm_to_vmem [thread:$0]  %s2, 256, %s233, [#allocation7], 64, 64, 4
        $region20: #{tpu_custom_call.1} parent=11 // pred_fallthru
          _
        // Predicated region
        $region21: #{tpu_custom_call.1} parent=11 // pred_check
          %p239 = pneg %p128
        $region22: #{tpu_custom_call.1} parent=11 // pred_check_branch
          %241 = sbr.rel (%p239) target = $region24
        $region23: #{tpu_custom_call.1} parent=11 // pred_region
          %s243 = ssub.s32 256, 256
          %244 = vsyncadd [#allocation10], %s243
          %s245 = sshll.u32 [#allocation9], 4
          %s246 = int_to_ptr.vmem [resolvable:$true] %s245
          %251 = dma.hbm_to_vmem [thread:$0]  %s3, 256, %s246, [#allocation10], 64, 64, 4
        $region24: #{tpu_custom_call.1} parent=11 // pred_fallthru
          _
        // Predicated region
        $region25: #{tpu_custom_call.1} parent=11 // pred_check
          %p252 = pneg %p149
        $region26: #{tpu_custom_call.1} parent=11 // pred_check_branch
          %254 = sbr.rel (%p252) target = $region28
        $region27: #{tpu_custom_call.1} parent=11 // pred_region
          %s256 = ssub.s32 256, 256
          %257 = vsyncadd [#allocation10], %s256
          %s258 = sshll.u32 [#allocation11], 4
          %s259 = int_to_ptr.vmem [resolvable:$true] %s258
          %264 = dma.hbm_to_vmem [thread:$0]  %s4, 256, %s259, [#allocation10], 64, 64, 4
        $region28: #{tpu_custom_call.1} parent=11 // pred_fallthru
          _
        // Predicated region
        $region29: #{tpu_custom_call.1} parent=11 // pred_check
          %p265 = pneg %p170
        $region30: #{tpu_custom_call.1} parent=11 // pred_check_branch
          %267 = sbr.rel (%p265) target = $region32
        $region31: #{tpu_custom_call.1} parent=11 // pred_region
          _
        $region32: #{tpu_custom_call.1} parent=11 // pred_fallthru
          _
      $region12: #{tpu_custom_call.1} parent=5 // pred_fallthru
        _
      %p268 = scmp.lt.s32.totalorder %s20, 2
      // Predicated region
      $region33: #{tpu_custom_call.1} parent=5 // pred_check
        %p269 = pneg %p268
      $region34: #{tpu_custom_call.1} parent=5 // pred_check_branch
        %271 = sbr.rel (%p269) target = $region36
      $region35: #{tpu_custom_call.1} parent=5 // pred_region
        // Predicated region
        $region37: #{tpu_custom_call.1} parent=35 // pred_check
          %p272 = pneg %p59
        $region38: #{tpu_custom_call.1} parent=35 // pred_check_branch
          %274 = sbr.rel (%p272) target = $region40
        $region39: #{tpu_custom_call.1} parent=35 // pred_region
          %s275 = sand.u32 %s49, 1
          %s276 = scalar_lea.sflag [#allocation4], %s275
          %s277 = sand.u32 %s49, 1
          %s278 = smul.addr %s277, 4
          %s279 = scalar_lea.vmem [#allocation3], %s278
          %s281 = ssub.s32 64, 64
          %282 = vsyncadd %s276, %s281
          %s283 = smul.addr %s27, 64
          %s284 = scalar_lea.hbm %s0, %s283
          %s286 = sshll.u32 %s279, 4
          %s287 = int_to_ptr.vmem [resolvable:$true] %s286
          %289 = dma.hbm_to_vmem [thread:$0]  %s284, 64, %s287, %s276
        $region40: #{tpu_custom_call.1} parent=35 // pred_fallthru
          _
      $region36: #{tpu_custom_call.1} parent=5 // pred_fallthru
        _
      %p290 = scmp.le.s32.totalorder 1, %s20
      %p291 = scmp.lt.s32.totalorder %s20, 3
      %p292 = pnand %p290, %p291
      %p293 = pneg %p292
      // Predicated region
      $region41: #{tpu_custom_call.1} parent=5 // pred_check
        _
      $region42: #{tpu_custom_call.1} parent=5 // pred_check_branch
        %295 = sbr.rel (%p292) target = $region44
      $region43: #{tpu_custom_call.1} parent=5 // pred_region
        %s296 = ssub.s32 %s20, 1
        %s297 = sand.u32 %s52, 1
        %s298 = scalar_lea.sflag [#allocation4], %s297
        %s299 = sand.u32 %s52, 1
        %s300 = smul.addr %s299, 4
        %s301 = scalar_lea.vmem [#allocation3], %s300
        // Predicated region
        $region45: #{tpu_custom_call.1} parent=43 // pred_check
          %p302 = pneg %p65
        $region46: #{tpu_custom_call.1} parent=43 // pred_check_branch
          %304 = sbr.rel (%p302) target = $region48
        $region47: #{tpu_custom_call.1} parent=43 // pred_region
          %305 = dma.done %s298, 64
        $region48: #{tpu_custom_call.1} parent=43 // pred_fallthru
          _
        // Predicated region
        $region49: #{tpu_custom_call.1} parent=43 // pred_check
          %p306 = pneg %p86
        $region50: #{tpu_custom_call.1} parent=43 // pred_check_branch
          %308 = sbr.rel (%p306) target = $region52
        $region51: #{tpu_custom_call.1} parent=43 // pred_region
          %309 = dma.done [#allocation7], 256
        $region52: #{tpu_custom_call.1} parent=43 // pred_fallthru
          _
        // Predicated region
        $region53: #{tpu_custom_call.1} parent=43 // pred_check
          %p310 = pneg %p107
        $region54: #{tpu_custom_call.1} parent=43 // pred_check_branch
          %312 = sbr.rel (%p310) target = $region56
        $region55: #{tpu_custom_call.1} parent=43 // pred_region
          %313 = dma.done [#allocation7], 256
        $region56: #{tpu_custom_call.1} parent=43 // pred_fallthru
          _
        // Predicated region
        $region57: #{tpu_custom_call.1} parent=43 // pred_check
          %p314 = pneg %p128
        $region58: #{tpu_custom_call.1} parent=43 // pred_check_branch
          %316 = sbr.rel (%p314) target = $region60
        $region59: #{tpu_custom_call.1} parent=43 // pred_region
          %317 = dma.done [#allocation10], 256
        $region60: #{tpu_custom_call.1} parent=43 // pred_fallthru
          _
        // Predicated region
        $region61: #{tpu_custom_call.1} parent=43 // pred_check
          %p318 = pneg %p149
        $region62: #{tpu_custom_call.1} parent=43 // pred_check_branch
          %320 = sbr.rel (%p318) target = $region64
        $region63: #{tpu_custom_call.1} parent=43 // pred_region
          %321 = dma.done [#allocation10], 256
        $region64: #{tpu_custom_call.1} parent=43 // pred_fallthru
          _
        %s322 = sand.u32 %s52, 1
        %s323 = scalar_lea.sflag [#allocation4], %s322
        %s324 = sand.u32 %s52, 1
        %s325 = smul.addr %s324, 4
        %s326 = scalar_lea.vmem [#allocation3], %s325
        %p327 = pneg %p65
        %p328 = pneg %p62
        %p329 = pneg %p86
        %p330 = pneg %p83
        %p331 = pneg %p107
        %p332 = pneg %p104
        %p333 = pneg %p128
        %p334 = pneg %p125
        %p335 = pneg %p149
        %p336 = pneg %p146
        %p337 = pneg %p170
        %p338 = pneg %p167
        %p339 = pneg %p198
        %p340 = pneg %p195
        %s341 = sand.u32 %s185, 1
        %s342 = scalar_lea.sflag [#allocation5], %s341
        %s343 = sand.u32 %s185, 1
        %s344 = smul.addr %s343, 8
        %s345 = scalar_lea.vmem [#allocation12], %s344
        %v347 = vld [vmem:[%s301] sm:$0xf]
        %s348 = smul.u32 %s32, 4
        %s349 = smul.addr %s348, 4
        %s350 = scalar_lea.vmem [#allocation6], %s349
        %v351 = vld [vmem:[%s350] sm:$0xf]
        %v352 = vld [vmem:[%s350 + $0x4] sm:$0xf]
        %v353 = vld [vmem:[%s350 + $0x8] sm:$0xf]
        %v354 = vld [vmem:[%s350 + $0xc] sm:$0xf]
        %v359 = vunpack.c.l.b16 %v351
        %v360 = vunpack.c.l.b16 %v352
        %v361 = vunpack.c.l.b16 %v353
        %v362 = vunpack.c.l.b16 %v354
        %v363 = vpack.c.b16 %v360, %v359
        %v364 = vpack.c.b16 %v362, %v361
        %vm367 = vcmask 261120
        %v369 = vsel %vm367, %v347, 0
        %371 = vmatprep.subr.bf16.mxu0 0
        %372 = vmatpush1.bf16.msra.mxu0 %v363
        %373 = vmatprep.subr.bf16.mxu0 0
        %374 = vmatpush1.bf16.msra.mxu0 %v364
        %375 = vmatprep.subr.bf16.mxu0 0
        %376 = vmatpush1.bf16.msra.mxu0 0
        %377 = vmatprep.subr.bf16.mxu0 0
        %378 = vmatpush1.bf16.msra.mxu0 0
        %379 = vmatprep.subr.bf16.mxu0 0
        %380 = vmatpush1.bf16.msra.mxu0 0
        %381 = vmatprep.subr.bf16.mxu0 0
        %382 = vmatpush1.bf16.msra.mxu0 0
        %383 = vmatprep.subr.bf16.mxu0 0
        %384 = vmatpush1.bf16.msra.mxu0 0
        %385 = vmatprep.subr.bf16.mxu0 0
        %386 = vmatpush1.bf16.msra.mxu0 0
        %387 = vmatprep.subr.bf16.mxu0 0
        %388 = vmatpush1.bf16.msra.mxu0 0
        %389 = vmatprep.subr.bf16.mxu0 0
        %390 = vmatpush1.bf16.msra.mxu0 0
        %391 = vmatprep.subr.bf16.mxu0 0
        %392 = vmatpush1.bf16.msra.mxu0 0
        %393 = vmatprep.subr.bf16.mxu0 0
        %394 = vmatpush1.bf16.msra.mxu0 0
        %395 = vmatprep.subr.bf16.mxu0 0
        %396 = vmatpush1.bf16.msra.mxu0 0
        %397 = vmatprep.subr.bf16.mxu0 0
        %398 = vmatpush1.bf16.msra.mxu0 0
        %399 = vmatprep.subr.bf16.mxu0 0
        %400 = vmatpush1.bf16.msra.mxu0 0
        %401 = vmatprep.subr.bf16.mxu0 0
        %402 = vmatpush1.bf16.msra.mxu0 0
        %403 = vmatprep.mubr.bf16.mxu0 0
        %404 = vmatmul.mubr.bf16.gmra.mrb[0].mxu0 %v369
        %v405 = vpop.f32.mrb[0].mxu0
        %v406 = vadd.f32 0.0, %v405
        %v407 = vpop.f32.mrb[0].mxu0
        %v408 = vpop.f32.mrb[0].mxu0
        %v409 = vpop.f32.mrb[0].mxu0
        %410 = vdwg.mxu0
        %v411 = vpack.c.bf16 %v406, %v406
        %s412 = smul.addr %s348, 4
        %s413 = scalar_lea.vmem [#allocation8], %s412
        %v414 = vld [vmem:[%s413] sm:$0xf]
        %v415 = vld [vmem:[%s413 + $0x4] sm:$0xf]
        %v416 = vld [vmem:[%s413 + $0x8] sm:$0xf]
        %v417 = vld [vmem:[%s413 + $0xc] sm:$0xf]
        %v422 = vunpack.c.l.b16 %v414
        %v423 = vunpack.c.l.b16 %v415
        %v424 = vunpack.c.l.b16 %v416
        %v425 = vunpack.c.l.b16 %v417
        %v426 = vpack.c.b16 %v423, %v422
        %v427 = vpack.c.b16 %v425, %v424
        %430 = vmatprep.subr.bf16.mxu0 0
        %431 = vmatpush1.bf16.msra.mxu0 %v426
        %432 = vmatprep.subr.bf16.mxu0 0
        %433 = vmatpush1.bf16.msra.mxu0 %v427
        %434 = vmatprep.subr.bf16.mxu0 0
        %435 = vmatpush1.bf16.msra.mxu0 0
        %436 = vmatprep.subr.bf16.mxu0 0
        %437 = vmatpush1.bf16.msra.mxu0 0
        %438 = vmatprep.subr.bf16.mxu0 0
        %439 = vmatpush1.bf16.msra.mxu0 0
        %440 = vmatprep.subr.bf16.mxu0 0
        %441 = vmatpush1.bf16.msra.mxu0 0
        %442 = vmatprep.subr.bf16.mxu0 0
        %443 = vmatpush1.bf16.msra.mxu0 0
        %444 = vmatprep.subr.bf16.mxu0 0
        %445 = vmatpush1.bf16.msra.mxu0 0
        %446 = vmatprep.subr.bf16.mxu0 0
        %447 = vmatpush1.bf16.msra.mxu0 0
        %448 = vmatprep.subr.bf16.mxu0 0
        %449 = vmatpush1.bf16.msra.mxu0 0
        %450 = vmatprep.subr.bf16.mxu0 0
        %451 = vmatpush1.bf16.msra.mxu0 0
        %452 = vmatprep.subr.bf16.mxu0 0
        %453 = vmatpush1.bf16.msra.mxu0 0
        %454 = vmatprep.subr.bf16.mxu0 0
        %455 = vmatpush1.bf16.msra.mxu0 0
        %456 = vmatprep.subr.bf16.mxu0 0
        %457 = vmatpush1.bf16.msra.mxu0 0
        %458 = vmatprep.subr.bf16.mxu0 0
        %459 = vmatpush1.bf16.msra.mxu0 0
        %460 = vmatprep.subr.bf16.mxu0 0
        %461 = vmatpush1.bf16.msra.mxu0 0
        %462 = vmatprep.mubr.bf16.mxu0 0
        %463 = vmatmul.mubr.bf16.gmra.mrb[0].mxu0 %v369
        %v464 = vpop.f32.mrb[0].mxu0
        %v465 = vadd.f32 0.0, %v464
        %v466 = vpop.f32.mrb[0].mxu0
        %v467 = vpop.f32.mrb[0].mxu0
        %v468 = vpop.f32.mrb[0].mxu0
        %469 = vdwg.mxu0
        %v470 = vpack.c.bf16 %v465, %v465
        %s471 = smul.addr %s348, 4
        %s472 = scalar_lea.vmem [#allocation9], %s471
        %v473 = vld [vmem:[%s472] sm:$0xf]
        %v474 = vld [vmem:[%s472 + $0x4] sm:$0xf]
        %v475 = vld [vmem:[%s472 + $0x8] sm:$0xf]
        %v476 = vld [vmem:[%s472 + $0xc] sm:$0xf]
        %v481 = vunpack.c.l.b16 %v473
        %v482 = vunpack.c.l.b16 %v474
        %v483 = vunpack.c.l.b16 %v475
        %v484 = vunpack.c.l.b16 %v476
        %v485 = vpack.c.b16 %v482, %v481
        %v486 = vpack.c.b16 %v484, %v483
        %489 = vmatprep.subr.bf16.mxu0 0
        %490 = vmatpush1.bf16.msra.mxu0 %v485
        %491 = vmatprep.subr.bf16.mxu0 0
        %492 = vmatpush1.bf16.msra.mxu0 %v486
        %493 = vmatprep.subr.bf16.mxu0 0
        %494 = vmatpush1.bf16.msra.mxu0 0
        %495 = vmatprep.subr.bf16.mxu0 0
        %496 = vmatpush1.bf16.msra.mxu0 0
        %497 = vmatprep.subr.bf16.mxu0 0
        %498 = vmatpush1.bf16.msra.mxu0 0
        %499 = vmatprep.subr.bf16.mxu0 0
        %500 = vmatpush1.bf16.msra.mxu0 0
        %501 = vmatprep.subr.bf16.mxu0 0
        %502 = vmatpush1.bf16.msra.mxu0 0
        %503 = vmatprep.subr.bf16.mxu0 0
        %504 = vmatpush1.bf16.msra.mxu0 0
        %505 = vmatprep.subr.bf16.mxu0 0
        %506 = vmatpush1.bf16.msra.mxu0 0
        %507 = vmatprep.subr.bf16.mxu0 0
        %508 = vmatpush1.bf16.msra.mxu0 0
        %509 = vmatprep.subr.bf16.mxu0 0
        %510 = vmatpush1.bf16.msra.mxu0 0
        %511 = vmatprep.subr.bf16.mxu0 0
        %512 = vmatpush1.bf16.msra.mxu0 0
        %513 = vmatprep.subr.bf16.mxu0 0
        %514 = vmatpush1.bf16.msra.mxu0 0
        %515 = vmatprep.subr.bf16.mxu0 0
        %516 = vmatpush1.bf16.msra.mxu0 0
        %517 = vmatprep.subr.bf16.mxu0 0
        %518 = vmatpush1.bf16.msra.mxu0 0
        %519 = vmatprep.subr.bf16.mxu0 0
        %520 = vmatpush1.bf16.msra.mxu0 0
        %521 = vmatprep.mubr.bf16.mxu0 0
        %522 = vmatmul.mubr.bf16.gmra.mrb[0].mxu0 %v369
        %v523 = vpop.f32.mrb[0].mxu0
        %v524 = vadd.f32 0.0, %v523
        %v525 = vpop.f32.mrb[0].mxu0
        %v526 = vpop.f32.mrb[0].mxu0
        %v527 = vpop.f32.mrb[0].mxu0
        %528 = vdwg.mxu0
        %v529 = vpack.c.bf16 %v524, %v524
        %vm530 = vcmask 64512
        %v532 = vsel %vm530, %v411, 0
        %v535 = vsel %vm530, %v470, 0
        %537 = vmatprep.subr.bf16.mxu0 0
        %538 = vmatpush1.bf16.xpose.msra.mxu0 %v535
        %539 = vmatprep.subr.bf16.mxu0 0
        %540 = vmatpush1.bf16.xpose.msra.mxu0 0
        %541 = vmatprep.subr.bf16.mxu0 0
        %542 = vmatpush1.bf16.xpose.msra.mxu0 0
        %543 = vmatprep.subr.bf16.mxu0 0
        %544 = vmatpush1.bf16.xpose.msra.mxu0 0
        %545 = vmatprep.subr.bf16.mxu0 0
        %546 = vmatpush1.bf16.xpose.msra.mxu0 0
        %547 = vmatprep.subr.bf16.mxu0 0
        %548 = vmatpush1.bf16.xpose.msra.mxu0 0
        %549 = vmatprep.subr.bf16.mxu0 0
        %550 = vmatpush1.bf16.xpose.msra.mxu0 0
        %551 = vmatprep.subr.bf16.mxu0 0
        %552 = vmatpush1.bf16.xpose.msra.mxu0 0
        %553 = vmatprep.subr.bf16.mxu0 0
        %554 = vmatpush1.bf16.xpose.msra.mxu0 0
        %555 = vmatprep.subr.bf16.mxu0 0
        %556 = vmatpush1.bf16.xpose.msra.mxu0 0
        %557 = vmatprep.subr.bf16.mxu0 0
        %558 = vmatpush1.bf16.xpose.msra.mxu0 0
        %559 = vmatprep.subr.bf16.mxu0 0
        %560 = vmatpush1.bf16.xpose.msra.mxu0 0
        %561 = vmatprep.subr.bf16.mxu0 0
        %562 = vmatpush1.bf16.xpose.msra.mxu0 0
        %563 = vmatprep.subr.bf16.mxu0 0
        %564 = vmatpush1.bf16.xpose.msra.mxu0 0
        %565 = vmatprep.subr.bf16.mxu0 0
        %566 = vmatpush1.bf16.xpose.msra.mxu0 0
        %567 = vmatprep.subr.bf16.mxu0 0
        %568 = vmatpush1.bf16.xpose.msra.mxu0 0
        %569 = vmatprep.mubr.bf16.mxu0 0
        %570 = vmatmul.mubr.bf16.gmra.mrb[0].mxu0 %v532
        %v571 = vpop.f32.mrb[0].mxu0
        %v572 = vadd.f32 0.0, %v571
        %v573 = vpop.f32.mrb[0].mxu0
        %v574 = vpop.f32.mrb[0].mxu0
        %v575 = vpop.f32.mrb[0].mxu0
        %576 = vdwg.mxu0
        %v577 = vsel %vm530, %v572, -inf
        %578 = vmax.xlane.f32.xlu0 %v577
        %v579 = vpop.xlane.xlu0 %578
        %v580 = vsub.f32 %v572, %v579
        %v581 = vmul.f32 %v580, 1.442695
        %v582 = vpow.pop %v581
        %v583 = vsel %vm530, %v582, 0.0
        %584 = vadd.xlane.f32.xlu0 %v583
        %v585 = vpop.xlane.xlu0 %584
        %v586 = vrcp.pop %v585
        %v587 = vmul.f32 %v582, %v586
        %v588 = vpack.c.bf16 %v587, %v587
        %v590 = vsel %vm530, %v588, 0
        %vm592 = vcmask 1043456
        %v594 = vsel %vm592, %v529, 0
        %596 = vmatprep.subr.bf16.mxu0 0
        %597 = vmatpush1.bf16.msra.mxu0 %v594
        %598 = vmatprep.subr.bf16.mxu0 0
        %599 = vmatpush1.bf16.msra.mxu0 0
        %600 = vmatprep.subr.bf16.mxu0 0
        %601 = vmatpush1.bf16.msra.mxu0 0
        %602 = vmatprep.subr.bf16.mxu0 0
        %603 = vmatpush1.bf16.msra.mxu0 0
        %604 = vmatprep.subr.bf16.mxu0 0
        %605 = vmatpush1.bf16.msra.mxu0 0
        %606 = vmatprep.subr.bf16.mxu0 0
        %607 = vmatpush1.bf16.msra.mxu0 0
        %608 = vmatprep.subr.bf16.mxu0 0
        %609 = vmatpush1.bf16.msra.mxu0 0
        %610 = vmatprep.subr.bf16.mxu0 0
        %611 = vmatpush1.bf16.msra.mxu0 0
        %612 = vmatprep.subr.bf16.mxu0 0
        %613 = vmatpush1.bf16.msra.mxu0 0
        %614 = vmatprep.subr.bf16.mxu0 0
        %615 = vmatpush1.bf16.msra.mxu0 0
        %616 = vmatprep.subr.bf16.mxu0 0
        %617 = vmatpush1.bf16.msra.mxu0 0
        %618 = vmatprep.subr.bf16.mxu0 0
        %619 = vmatpush1.bf16.msra.mxu0 0
        %620 = vmatprep.subr.bf16.mxu0 0
        %621 = vmatpush1.bf16.msra.mxu0 0
        %622 = vmatprep.subr.bf16.mxu0 0
        %623 = vmatpush1.bf16.msra.mxu0 0
        %624 = vmatprep.subr.bf16.mxu0 0
        %625 = vmatpush1.bf16.msra.mxu0 0
        %626 = vmatprep.subr.bf16.mxu0 0
        %627 = vmatpush1.bf16.msra.mxu0 0
        %628 = vmatprep.mubr.bf16.mxu0 0
        %629 = vmatmul.mubr.bf16.gmra.mrb[0].mxu0 %v590
        %v630 = vpop.f32.mrb[0].mxu0
        %v631 = vadd.f32 0.0, %v630
        %v632 = vpop.f32.mrb[0].mxu0
        %v633 = vpop.f32.mrb[0].mxu0
        %v634 = vpop.f32.mrb[0].mxu0
        %635 = vdwg.mxu0
        %v636 = vpack.c.bf16 %v631, %v631
        %638 = vrot.lane.b32.xlu0 %v411, 120
        %v639 = vpop.permute.xlu0 %638
        %641 = vrot.lane.b32.xlu0 %v470, 120
        %v642 = vpop.permute.xlu0 %641
        %v644 = vsel %vm530, %v639, 0
        %v647 = vsel %vm530, %v642, 0
        %649 = vmatprep.subr.bf16.mxu0 0
        %650 = vmatpush1.bf16.xpose.msra.mxu0 %v647
        %651 = vmatprep.subr.bf16.mxu0 0
        %652 = vmatpush1.bf16.xpose.msra.mxu0 0
        %653 = vmatprep.subr.bf16.mxu0 0
        %654 = vmatpush1.bf16.xpose.msra.mxu0 0
        %655 = vmatprep.subr.bf16.mxu0 0
        %656 = vmatpush1.bf16.xpose.msra.mxu0 0
        %657 = vmatprep.subr.bf16.mxu0 0
        %658 = vmatpush1.bf16.xpose.msra.mxu0 0
        %659 = vmatprep.subr.bf16.mxu0 0
        %660 = vmatpush1.bf16.xpose.msra.mxu0 0
        %661 = vmatprep.subr.bf16.mxu0 0
        %662 = vmatpush1.bf16.xpose.msra.mxu0 0
        %663 = vmatprep.subr.bf16.mxu0 0
        %664 = vmatpush1.bf16.xpose.msra.mxu0 0
        %665 = vmatprep.subr.bf16.mxu0 0
        %666 = vmatpush1.bf16.xpose.msra.mxu0 0
        %667 = vmatprep.subr.bf16.mxu0 0
        %668 = vmatpush1.bf16.xpose.msra.mxu0 0
        %669 = vmatprep.subr.bf16.mxu0 0
        %670 = vmatpush1.bf16.xpose.msra.mxu0 0
        %671 = vmatprep.subr.bf16.mxu0 0
        %672 = vmatpush1.bf16.xpose.msra.mxu0 0
        %673 = vmatprep.subr.bf16.mxu0 0
        %674 = vmatpush1.bf16.xpose.msra.mxu0 0
        %675 = vmatprep.subr.bf16.mxu0 0
        %676 = vmatpush1.bf16.xpose.msra.mxu0 0
        %677 = vmatprep.subr.bf16.mxu0 0
        %678 = vmatpush1.bf16.xpose.msra.mxu0 0
        %679 = vmatprep.subr.bf16.mxu0 0
        %680 = vmatpush1.bf16.xpose.msra.mxu0 0
        %681 = vmatprep.mubr.bf16.mxu0 0
        %682 = vmatmul.mubr.bf16.gmra.mrb[0].mxu0 %v644
        %v683 = vpop.f32.mrb[0].mxu0
        %v684 = vadd.f32 0.0, %v683
        %v685 = vpop.f32.mrb[0].mxu0
        %v686 = vpop.f32.mrb[0].mxu0
        %v687 = vpop.f32.mrb[0].mxu0
        %688 = vdwg.mxu0
        %v689 = vsel %vm530, %v684, -inf
        %690 = vmax.xlane.f32.xlu0 %v689
        %v691 = vpop.xlane.xlu0 %690
        %v692 = vsub.f32 %v684, %v691
        %v693 = vmul.f32 %v692, 1.442695
        %v694 = vpow.pop %v693
        %v695 = vsel %vm530, %v694, 0.0
        %696 = vadd.xlane.f32.xlu0 %v695
        %v697 = vpop.xlane.xlu0 %696
        %v698 = vrcp.pop %v697
        %v699 = vmul.f32 %v694, %v698
        %v700 = vpack.c.bf16 %v699, %v699
        %702 = vrot.lane.b32.xlu0 %v529, 120
        %v703 = vpop.permute.xlu0 %702
        %v705 = vsel %vm530, %v700, 0
        %v708 = vsel %vm592, %v703, 0
        %710 = vmatprep.subr.bf16.mxu0 0
        %711 = vmatpush1.bf16.msra.mxu0 %v708
        %712 = vmatprep.subr.bf16.mxu0 0
        %713 = vmatpush1.bf16.msra.mxu0 0
        %714 = vmatprep.subr.bf16.mxu0 0
        %715 = vmatpush1.bf16.msra.mxu0 0
        %716 = vmatprep.subr.bf16.mxu0 0
        %717 = vmatpush1.bf16.msra.mxu0 0
        %718 = vmatprep.subr.bf16.mxu0 0
        %719 = vmatpush1.bf16.msra.mxu0 0
        %720 = vmatprep.subr.bf16.mxu0 0
        %721 = vmatpush1.bf16.msra.mxu0 0
        %722 = vmatprep.subr.bf16.mxu0 0
        %723 = vmatpush1.bf16.msra.mxu0 0
        %724 = vmatprep.subr.bf16.mxu0 0
        %725 = vmatpush1.bf16.msra.mxu0 0
        %726 = vmatprep.subr.bf16.mxu0 0
        %727 = vmatpush1.bf16.msra.mxu0 0
        %728 = vmatprep.subr.bf16.mxu0 0
        %729 = vmatpush1.bf16.msra.mxu0 0
        %730 = vmatprep.subr.bf16.mxu0 0
        %731 = vmatpush1.bf16.msra.mxu0 0
        %732 = vmatprep.subr.bf16.mxu0 0
        %733 = vmatpush1.bf16.msra.mxu0 0
        %734 = vmatprep.subr.bf16.mxu0 0
        %735 = vmatpush1.bf16.msra.mxu0 0
        %736 = vmatprep.subr.bf16.mxu0 0
        %737 = vmatpush1.bf16.msra.mxu0 0
        %738 = vmatprep.subr.bf16.mxu0 0
        %739 = vmatpush1.bf16.msra.mxu0 0
        %740 = vmatprep.subr.bf16.mxu0 0
        %741 = vmatpush1.bf16.msra.mxu0 0
        %742 = vmatprep.mubr.bf16.mxu0 0
        %743 = vmatmul.mubr.bf16.gmra.mrb[0].mxu0 %v705
        %v744 = vpop.f32.mrb[0].mxu0
        %v745 = vadd.f32 0.0, %v744
        %v746 = vpop.f32.mrb[0].mxu0
        %v747 = vpop.f32.mrb[0].mxu0
        %v748 = vpop.f32.mrb[0].mxu0
        %749 = vdwg.mxu0
        %v750 = vpack.c.bf16 %v745, %v745
        %751 = vrot.lane.b32.xlu0 %v411, 112
        %v752 = vpop.permute.xlu0 %751
        %753 = vrot.lane.b32.xlu0 %v470, 112
        %v754 = vpop.permute.xlu0 %753
        %v756 = vsel %vm530, %v752, 0
        %v759 = vsel %vm530, %v754, 0
        %761 = vmatprep.subr.bf16.mxu0 0
        %762 = vmatpush1.bf16.xpose.msra.mxu0 %v759
        %763 = vmatprep.subr.bf16.mxu0 0
        %764 = vmatpush1.bf16.xpose.msra.mxu0 0
        %765 = vmatprep.subr.bf16.mxu0 0
        %766 = vmatpush1.bf16.xpose.msra.mxu0 0
        %767 = vmatprep.subr.bf16.mxu0 0
        %768 = vmatpush1.bf16.xpose.msra.mxu0 0
        %769 = vmatprep.subr.bf16.mxu0 0
        %770 = vmatpush1.bf16.xpose.msra.mxu0 0
        %771 = vmatprep.subr.bf16.mxu0 0
        %772 = vmatpush1.bf16.xpose.msra.mxu0 0
        %773 = vmatprep.subr.bf16.mxu0 0
        %774 = vmatpush1.bf16.xpose.msra.mxu0 0
        %775 = vmatprep.subr.bf16.mxu0 0
        %776 = vmatpush1.bf16.xpose.msra.mxu0 0
        %777 = vmatprep.subr.bf16.mxu0 0
        %778 = vmatpush1.bf16.xpose.msra.mxu0 0
        %779 = vmatprep.subr.bf16.mxu0 0
        %780 = vmatpush1.bf16.xpose.msra.mxu0 0
        %781 = vmatprep.subr.bf16.mxu0 0
        %782 = vmatpush1.bf16.xpose.msra.mxu0 0
        %783 = vmatprep.subr.bf16.mxu0 0
        %784 = vmatpush1.bf16.xpose.msra.mxu0 0
        %785 = vmatprep.subr.bf16.mxu0 0
        %786 = vmatpush1.bf16.xpose.msra.mxu0 0
        %787 = vmatprep.subr.bf16.mxu0 0
        %788 = vmatpush1.bf16.xpose.msra.mxu0 0
        %789 = vmatprep.subr.bf16.mxu0 0
        %790 = vmatpush1.bf16.xpose.msra.mxu0 0
        %791 = vmatprep.subr.bf16.mxu0 0
        %792 = vmatpush1.bf16.xpose.msra.mxu0 0
        %793 = vmatprep.mubr.bf16.mxu0 0
        %794 = vmatmul.mubr.bf16.gmra.mrb[0].mxu0 %v756
        %v795 = vpop.f32.mrb[0].mxu0
        %v796 = vadd.f32 0.0, %v795
        %v797 = vpop.f32.mrb[0].mxu0
        %v798 = vpop.f32.mrb[0].mxu0
        %v799 = vpop.f32.mrb[0].mxu0
        %800 = vdwg.mxu0
        %v801 = vsel %vm530, %v796, -inf
        %802 = vmax.xlane.f32.xlu0 %v801
        %v803 = vpop.xlane.xlu0 %802
        %v804 = vsub.f32 %v796, %v803
        %v805 = vmul.f32 %v804, 1.442695
        %v806 = vpow.pop %v805
        %v807 = vsel %vm530, %v806, 0.0
        %808 = vadd.xlane.f32.xlu0 %v807
        %v809 = vpop.xlane.xlu0 %808
        %v810 = vrcp.pop %v809
        %v811 = vmul.f32 %v806, %v810
        %v812 = vpack.c.bf16 %v811, %v811
        %813 = vrot.lane.b32.xlu0 %v529, 112
        %v814 = vpop.permute.xlu0 %813
        %v816 = vsel %vm530, %v812, 0
        %v819 = vsel %vm592, %v814, 0
        %821 = vmatprep.subr.bf16.mxu0 0
        %822 = vmatpush1.bf16.msra.mxu0 %v819
        %823 = vmatprep.subr.bf16.mxu0 0
        %824 = vmatpush1.bf16.msra.mxu0 0
        %825 = vmatprep.subr.bf16.mxu0 0
        %826 = vmatpush1.bf16.msra.mxu0 0
        %827 = vmatprep.subr.bf16.mxu0 0
        %828 = vmatpush1.bf16.msra.mxu0 0
        %829 = vmatprep.subr.bf16.mxu0 0
        %830 = vmatpush1.bf16.msra.mxu0 0
        %831 = vmatprep.subr.bf16.mxu0 0
        %832 = vmatpush1.bf16.msra.mxu0 0
        %833 = vmatprep.subr.bf16.mxu0 0
        %834 = vmatpush1.bf16.msra.mxu0 0
        %835 = vmatprep.subr.bf16.mxu0 0
        %836 = vmatpush1.bf16.msra.mxu0 0
        %837 = vmatprep.subr.bf16.mxu0 0
        %838 = vmatpush1.bf16.msra.mxu0 0
        %839 = vmatprep.subr.bf16.mxu0 0
        %840 = vmatpush1.bf16.msra.mxu0 0
        %841 = vmatprep.subr.bf16.mxu0 0
        %842 = vmatpush1.bf16.msra.mxu0 0
        %843 = vmatprep.subr.bf16.mxu0 0
        %844 = vmatpush1.bf16.msra.mxu0 0
        %845 = vmatprep.subr.bf16.mxu0 0
        %846 = vmatpush1.bf16.msra.mxu0 0
        %847 = vmatprep.subr.bf16.mxu0 0
        %848 = vmatpush1.bf16.msra.mxu0 0
        %849 = vmatprep.subr.bf16.mxu0 0
        %850 = vmatpush1.bf16.msra.mxu0 0
        %851 = vmatprep.subr.bf16.mxu0 0
        %852 = vmatpush1.bf16.msra.mxu0 0
        %853 = vmatprep.mubr.bf16.mxu0 0
        %854 = vmatmul.mubr.bf16.gmra.mrb[0].mxu0 %v816
        %v855 = vpop.f32.mrb[0].mxu0
        %v856 = vadd.f32 0.0, %v855
        %v857 = vpop.f32.mrb[0].mxu0
        %v858 = vpop.f32.mrb[0].mxu0
        %v859 = vpop.f32.mrb[0].mxu0
        %860 = vdwg.mxu0
        %v861 = vpack.c.bf16 %v856, %v856
        %862 = vrot.lane.b32.xlu0 %v411, 104
        %v863 = vpop.permute.xlu0 %862
        %864 = vrot.lane.b32.xlu0 %v470, 104
        %v865 = vpop.permute.xlu0 %864
        %v867 = vsel %vm530, %v863, 0
        %v870 = vsel %vm530, %v865, 0
        %872 = vmatprep.subr.bf16.mxu0 0
        %873 = vmatpush1.bf16.xpose.msra.mxu0 %v870
        %874 = vmatprep.subr.bf16.mxu0 0
        %875 = vmatpush1.bf16.xpose.msra.mxu0 0
        %876 = vmatprep.subr.bf16.mxu0 0
        %877 = vmatpush1.bf16.xpose.msra.mxu0 0
        %878 = vmatprep.subr.bf16.mxu0 0
        %879 = vmatpush1.bf16.xpose.msra.mxu0 0
        %880 = vmatprep.subr.bf16.mxu0 0
        %881 = vmatpush1.bf16.xpose.msra.mxu0 0
        %882 = vmatprep.subr.bf16.mxu0 0
        %883 = vmatpush1.bf16.xpose.msra.mxu0 0
        %884 = vmatprep.subr.bf16.mxu0 0
        %885 = vmatpush1.bf16.xpose.msra.mxu0 0
        %886 = vmatprep.subr.bf16.mxu0 0
        %887 = vmatpush1.bf16.xpose.msra.mxu0 0
        %888 = vmatprep.subr.bf16.mxu0 0
        %889 = vmatpush1.bf16.xpose.msra.mxu0 0
        %890 = vmatprep.subr.bf16.mxu0 0
        %891 = vmatpush1.bf16.xpose.msra.mxu0 0
        %892 = vmatprep.subr.bf16.mxu0 0
        %893 = vmatpush1.bf16.xpose.msra.mxu0 0
        %894 = vmatprep.subr.bf16.mxu0 0
        %895 = vmatpush1.bf16.xpose.msra.mxu0 0
        %896 = vmatprep.subr.bf16.mxu0 0
        %897 = vmatpush1.bf16.xpose.msra.mxu0 0
        %898 = vmatprep.subr.bf16.mxu0 0
        %899 = vmatpush1.bf16.xpose.msra.mxu0 0
        %900 = vmatprep.subr.bf16.mxu0 0
        %901 = vmatpush1.bf16.xpose.msra.mxu0 0
        %902 = vmatprep.subr.bf16.mxu0 0
        %903 = vmatpush1.bf16.xpose.msra.mxu0 0
        %904 = vmatprep.mubr.bf16.mxu0 0
        %905 = vmatmul.mubr.bf16.gmra.mrb[0].mxu0 %v867
        %v906 = vpop.f32.mrb[0].mxu0
        %v907 = vadd.f32 0.0, %v906
        %v908 = vpop.f32.mrb[0].mxu0
        %v909 = vpop.f32.mrb[0].mxu0
        %v910 = vpop.f32.mrb[0].mxu0
        %911 = vdwg.mxu0
        %v912 = vsel %vm530, %v907, -inf
        %913 = vmax.xlane.f32.xlu0 %v912
        %v914 = vpop.xlane.xlu0 %913
        %v915 = vsub.f32 %v907, %v914
        %v916 = vmul.f32 %v915, 1.442695
        %v917 = vpow.pop %v916
        %v918 = vsel %vm530, %v917, 0.0
        %919 = vadd.xlane.f32.xlu0 %v918
        %v920 = vpop.xlane.xlu0 %919
        %v921 = vrcp.pop %v920
        %v922 = vmul.f32 %v917, %v921
        %v923 = vpack.c.bf16 %v922, %v922
        %924 = vrot.lane.b32.xlu0 %v529, 104
        %v925 = vpop.permute.xlu0 %924
        %v927 = vsel %vm530, %v923, 0
        %v930 = vsel %vm592, %v925, 0
        %932 = vmatprep.subr.bf16.mxu0 0
        %933 = vmatpush1.bf16.msra.mxu0 %v930
        %934 = vmatprep.subr.bf16.mxu0 0
        %935 = vmatpush1.bf16.msra.mxu0 0
        %936 = vmatprep.subr.bf16.mxu0 0
        %937 = vmatpush1.bf16.msra.mxu0 0
        %938 = vmatprep.subr.bf16.mxu0 0
        %939 = vmatpush1.bf16.msra.mxu0 0
        %940 = vmatprep.subr.bf16.mxu0 0
        %941 = vmatpush1.bf16.msra.mxu0 0
        %942 = vmatprep.subr.bf16.mxu0 0
        %943 = vmatpush1.bf16.msra.mxu0 0
        %944 = vmatprep.subr.bf16.mxu0 0
        %945 = vmatpush1.bf16.msra.mxu0 0
        %946 = vmatprep.subr.bf16.mxu0 0
        %947 = vmatpush1.bf16.msra.mxu0 0
        %948 = vmatprep.subr.bf16.mxu0 0
        %949 = vmatpush1.bf16.msra.mxu0 0
        %950 = vmatprep.subr.bf16.mxu0 0
        %951 = vmatpush1.bf16.msra.mxu0 0
        %952 = vmatprep.subr.bf16.mxu0 0
        %953 = vmatpush1.bf16.msra.mxu0 0
        %954 = vmatprep.subr.bf16.mxu0 0
        %955 = vmatpush1.bf16.msra.mxu0 0
        %956 = vmatprep.subr.bf16.mxu0 0
        %957 = vmatpush1.bf16.msra.mxu0 0
        %958 = vmatprep.subr.bf16.mxu0 0
        %959 = vmatpush1.bf16.msra.mxu0 0
        %960 = vmatprep.subr.bf16.mxu0 0
        %961 = vmatpush1.bf16.msra.mxu0 0
        %962 = vmatprep.subr.bf16.mxu0 0
        %963 = vmatpush1.bf16.msra.mxu0 0
        %964 = vmatprep.mubr.bf16.mxu0 0
        %965 = vmatmul.mubr.bf16.gmra.mrb[0].mxu0 %v927
        %v966 = vpop.f32.mrb[0].mxu0
        %v967 = vadd.f32 0.0, %v966
        %v968 = vpop.f32.mrb[0].mxu0
        %v969 = vpop.f32.mrb[0].mxu0
        %v970 = vpop.f32.mrb[0].mxu0
        %971 = vdwg.mxu0
        %v972 = vpack.c.bf16 %v967, %v967
        %974 = vrot.lane.b32.xlu0 %v750, 8
        %v975 = vpop.permute.xlu0 %974
        %977 = vrot.lane.b32.xlu0 %v861, 16
        %v978 = vpop.permute.xlu0 %977
        %980 = vrot.lane.b32.xlu0 %v972, 24
        %v981 = vpop.permute.xlu0 %980
        %v984 = vsel %vm530, %v636, %v975
        %vm985 = vcmask 130048
        %v987 = vsel %vm985, %v984, %v978
        %vm988 = vcmask 195584
        %v990 = vsel %vm988, %v987, %v981
        %p991 = scmp.eq.s32.totalorder %s32, 0
        // Predicated region
        $region65: #{tpu_custom_call.1} parent=43 // pred_check
          %p992 = pneg %p991
        $region66: #{tpu_custom_call.1} parent=43 // pred_check_branch
          %994 = sbr.rel (%p992) target = $region68
        $region67: #{tpu_custom_call.1} parent=43 // pred_region
          %v995 = vld [vmem:[#allocation11] sm:$0xf]
          %v996 = vld [vmem:[#allocation11 + $0x4] sm:$0xf]
          %v997 = vld [vmem:[#allocation11 + $0x8] sm:$0xf]
          %v998 = vld [vmem:[#allocation11 + $0xc] sm:$0xf]
          %v999 = vld [vmem:[%s5] sm:$0x1]
          %v1001 = vlaneseq
          %v1002 = vshrl.u32 %v1001, 7
          %v1003 = vsub.s32 0, %v1002
          %v1004 = vrot.slane %v999, %v1003
          %v1010 = vunpack.c.l.b16 %v995
          %v1011 = vunpack.c.l.b16 %v996
          %v1012 = vunpack.c.l.b16 %v997
          %v1013 = vunpack.c.l.b16 %v998
          %v1014 = vpack.c.b16 %v1011, %v1010
          %v1015 = vpack.c.b16 %v1013, %v1012
          %v1018 = vsel %vm367, %v990, 0
          %1020 = vmatprep.subr.bf16.mxu0 0
          %1021 = vmatpush1.bf16.msra.mxu0 %v1014
          %1022 = vmatprep.subr.bf16.mxu0 0
          %1023 = vmatpush1.bf16.msra.mxu0 %v1015
          %1024 = vmatprep.subr.bf16.mxu0 0
          %1025 = vmatpush1.bf16.msra.mxu0 0
          %1026 = vmatprep.subr.bf16.mxu0 0
          %1027 = vmatpush1.bf16.msra.mxu0 0
          %1028 = vmatprep.subr.bf16.mxu0 0
          %1029 = vmatpush1.bf16.msra.mxu0 0
          %1030 = vmatprep.subr.bf16.mxu0 0
          %1031 = vmatpush1.bf16.msra.mxu0 0
          %1032 = vmatprep.subr.bf16.mxu0 0
          %1033 = vmatpush1.bf16.msra.mxu0 0
          %1034 = vmatprep.subr.bf16.mxu0 0
          %1035 = vmatpush1.bf16.msra.mxu0 0
          %1036 = vmatprep.subr.bf16.mxu0 0
          %1037 = vmatpush1.bf16.msra.mxu0 0
          %1038 = vmatprep.subr.bf16.mxu0 0
          %1039 = vmatpush1.bf16.msra.mxu0 0
          %1040 = vmatprep.subr.bf16.mxu0 0
          %1041 = vmatpush1.bf16.msra.mxu0 0
          %1042 = vmatprep.subr.bf16.mxu0 0
          %1043 = vmatpush1.bf16.msra.mxu0 0
          %1044 = vmatprep.subr.bf16.mxu0 0
          %1045 = vmatpush1.bf16.msra.mxu0 0
          %1046 = vmatprep.subr.bf16.mxu0 0
          %1047 = vmatpush1.bf16.msra.mxu0 0
          %1048 = vmatprep.subr.bf16.mxu0 0
          %1049 = vmatpush1.bf16.msra.mxu0 0
          %1050 = vmatprep.subr.bf16.mxu0 0
          %1051 = vmatpush1.bf16.msra.mxu0 0
          %1052 = vmatprep.mubr.bf16.mxu0 0
          %1053 = vmatmul.mubr.bf16.gmra.mrb[0].mxu0 %v1018
          %v1054 = vpop.f32.mrb[0].mxu0
          %v1055 = vadd.f32 %v1004, %v1054
          %v1056 = vpop.f32.mrb[0].mxu0
          %v1057 = vpop.f32.mrb[0].mxu0
          %v1058 = vpop.f32.mrb[0].mxu0
          %1059 = vdwg.mxu0
          %1060 = vst.msk [vmem:[%s345] sm:$0xff] %vm367, %v1055
        $region68: #{tpu_custom_call.1} parent=43 // pred_fallthru
          _
        %s1061 = sand.u32 %s185, 1
        %s1062 = scalar_lea.sflag [#allocation5], %s1061
        %s1063 = sand.u32 %s185, 1
        %s1064 = smul.addr %s1063, 8
        %s1065 = scalar_lea.vmem [#allocation12], %s1064
        // Predicated region
        $region69: #{tpu_custom_call.1} parent=43 // pred_check
          %p1066 = pneg %p195
        $region70: #{tpu_custom_call.1} parent=43 // pred_check_branch
          %1068 = sbr.rel (%p1066) target = $region72
        $region71: #{tpu_custom_call.1} parent=43 // pred_region
          %s1070 = ssub.s32 128, 128
          %1071 = vsyncadd %s1062, %s1070
          %s1072 = sadd.s32 %s31, %s30
          %s1073 = smul.addr %s1072, 128
          %s1074 = scalar_lea.hbm %s6, %s1073
          %s1076 = sshll.u32 %s1065, 4
          %s1077 = int_to_ptr.vmem [resolvable:$true] %s1076
          %1079 = dma.vmem_to_hbm [thread:$0]  %s1077, 128, %s1074, %s1062
        $region72: #{tpu_custom_call.1} parent=43 // pred_fallthru
          _
      $region44: #{tpu_custom_call.1} parent=5 // pred_fallthru
        _
      %p1080 = scmp.le.s32.totalorder 2, %s20
      // Predicated region
      $region73: #{tpu_custom_call.1} parent=5 // pred_check
        %p1081 = pneg %p1080
      $region74: #{tpu_custom_call.1} parent=5 // pred_check_branch
        %1083 = sbr.rel (%p1081) target = $region76
      $region75: #{tpu_custom_call.1} parent=5 // pred_region
        %s1084 = ssub.s32 %s20, 2
        // Predicated region
        $region77: #{tpu_custom_call.1} parent=75 // pred_check
          %p1085 = pneg %p201
        $region78: #{tpu_custom_call.1} parent=75 // pred_check_branch
          %1087 = sbr.rel (%p1085) target = $region80
        $region79: #{tpu_custom_call.1} parent=75 // pred_region
          %s1088 = sand.u32 %s186, 1
          %s1089 = scalar_lea.sflag [#allocation5], %s1088
          %s1090 = sand.u32 %s186, 1
          %s1091 = smul.addr %s1090, 8
          %s1092 = scalar_lea.vmem [#allocation12], %s1091
          %1093 = dma.done %s1089, 128
        $region80: #{tpu_custom_call.1} parent=75 // pred_fallthru
          _
      $region76: #{tpu_custom_call.1} parent=5 // pred_fallthru
        _
    $region6: #{tpu_custom_call.1} parent=1 // loop_footer
      %s24 = sadd.s32 1, %s20
    $region7: #{tpu_custom_call.1} parent=1 // loop_footer_branch
      %19 = sbr.rel target = $region3
    $region8: #{tpu_custom_call.1} parent=1 // loop_exit
      _
    %1094 = vsyncpa [#allocation4], 1
    %s1095 = scalar_lea.sflag [#allocation4], 1
    %1096 = vsyncpa %s1095, 1
    %1097 = vsyncpa [#allocation7], 1
    %1098 = vsyncpa [#allocation10], 1
    %1099 = vsyncpa [#allocation5], 1
    %s1100 = scalar_lea.sflag [#allocation5], 1
    %1101 = vsyncpa %s1100, 1

</llo_original>
